<compile_context>
chip_gen: v5e
topology: v5e:2x2
jax: 0.10.0
libtpu: 0.0.40
codegen_flags: <defaults>
</compile_context>

<pallas_src>
import functools
import math

import jax
import jax.numpy as jnp
from jax import lax
from jax.experimental import pallas as pl
from jax.experimental.pallas import tpu as pltpu


# ---------------------------------------------------------------------------
# Shared per-head attention core (operates on [S, D] projections in VMEM)
# ---------------------------------------------------------------------------
def _attention_core(q, k, v, mask_bool, h, d_k):
    f32 = jnp.float32
    ctx_heads = []
    for hh in range(h):
        lo = hh * d_k
        qh = q[:, lo:lo + d_k]
        kh = k[:, lo:lo + d_k]
        vh = v[:, lo:lo + d_k]
        # scores[s, t] = sum_d qh[s, d] * kh[t, d]   (no explicit kh.T relayout)
        scores = lax.dot_general(
            qh, kh, (((1,), (1,)), ((), ())), preferred_element_type=f32)
        if mask_bool is not None:
            # exact masked_fill(mask == 0, -1e9) semantics
            scores = jnp.where(mask_bool, scores, -1e9)
        m = jnp.max(scores, axis=-1, keepdims=True)
        p = jnp.exp(scores - m)
        denom = jnp.sum(p, axis=-1, keepdims=True)
        p = p * pl.reciprocal(denom, approx=True)
        ctx_heads.append(jnp.dot(p, vh, preferred_element_type=f32))
    # merge heads on the lane dimension -> [S, D]
    return jnp.concatenate(ctx_heads, axis=-1)


# ---------------------------------------------------------------------------
# Kernel A: self-attention fast path (single x input, fused QKV weight)
# ---------------------------------------------------------------------------
def _mha_self_kernel(*refs, h, has_mask, d_model):
    if has_mask:
        (x_ref, mask_ref, wqkv_ref, bqkv_ref, wo_ref, bo_ref, o_ref) = refs
    else:
        (x_ref, wqkv_ref, bqkv_ref, wo_ref, bo_ref, o_ref) = refs
        mask_ref = None

    f32 = jnp.float32
    d_k = d_model // h

    # One [S, D] x [D, 3D] projection; weights resident in VMEM across grid.
    qkv = jnp.dot(x_ref[...], wqkv_ref[...], preferred_element_type=f32) + bqkv_ref[...]
    # Fold 1/sqrt(d_k) into q (S*D elements) instead of scaling scores (S*S).
    q = qkv[:, :d_model] * (1.0 / math.sqrt(d_k))
    k = qkv[:, d_model:2 * d_model]
    v = qkv[:, 2 * d_model:]

    mask_bool = (mask_ref[...] > 0.0) if mask_ref is not None else None
    ctx = _attention_core(q, k, v, mask_bool, h, d_k)

    out = jnp.dot(ctx, wo_ref[...], preferred_element_type=f32) + bo_ref[...]
    o_ref[...] = out.astype(o_ref.dtype)


# ---------------------------------------------------------------------------
# Kernel B: general path (distinct query/key/value activations)
# ---------------------------------------------------------------------------
def _mha_general_kernel(*refs, h, has_mask, d_model):
    if has_mask:
        (xq_ref, xk_ref, xv_ref, mask_ref,
         wq_ref, bq_ref, wk_ref, bk_ref, wv_ref, bv_ref,
         wo_ref, bo_ref, o_ref) = refs
    else:
        (xq_ref, xk_ref, xv_ref,
         wq_ref, bq_ref, wk_ref, bk_ref, wv_ref, bv_ref,
         wo_ref, bo_ref, o_ref) = refs
        mask_ref = None

    f32 = jnp.float32
    d_k = d_model // h

    q = jnp.dot(xq_ref[...], wq_ref[...], preferred_element_type=f32) + bq_ref[...]
    k = jnp.dot(xk_ref[...], wk_ref[...], preferred_element_type=f32) + bk_ref[...]
    v = jnp.dot(xv_ref[...], wv_ref[...], preferred_element_type=f32) + bv_ref[...]
    q = q * (1.0 / math.sqrt(d_k))

    mask_bool = (mask_ref[...] > 0.0) if mask_ref is not None else None
    ctx = _attention_core(q, k, v, mask_bool, h, d_k)

    out = jnp.dot(ctx, wo_ref[...], preferred_element_type=f32) + bo_ref[...]
    o_ref[...] = out.astype(o_ref.dtype)


# ---------------------------------------------------------------------------
# Wrapper
# ---------------------------------------------------------------------------
def multi_headed_attention(query, key, value, params, h, mask=None):
    """query/key/value: [B, S, D]; optional mask: [B, S, S] or [B, 1, S, S]."""
    B, S, D = query.shape
    assert D % h == 0

    self_attn = (query is key) and (key is value)

    has_mask = mask is not None
    if has_mask:
        mask = jnp.asarray(mask)
        if mask.ndim == 4:                      # PyTorch-style [B, 1, S, S]
            mask = mask.reshape(B, S, S)
        mask = mask.astype(jnp.float32)

    x_spec = pl.BlockSpec((pl.Squeezed(), S, D), lambda b: (b, 0, 0))
    mask_spec = pl.BlockSpec((pl.Squeezed(), S, S), lambda b: (b, 0, 0))

    def w_spec(cols):                           # constant index_map -> resident
        return pl.BlockSpec((D, cols), lambda b: (0, 0))

    def b_spec(cols):
        return pl.BlockSpec((1, cols), lambda b: (0, 0))

    if self_attn:
        # Fused QKV: activation DMA'd once, single [S, D] x [D, 3D] matmul.
        # (Weight concat is a tiny one-shot XLA op relative to activations.)
        wqkv = jnp.concatenate([params["wq"], params["wk"], params["wv"]], axis=1)
        bqkv = jnp.concatenate(
            [params["bq"], params["bk"], params["bv"]]).reshape(1, 3 * D)

        in_specs = [x_spec]
        inputs = [query]
        if has_mask:
            in_specs.append(mask_spec)
            inputs.append(mask)
        in_specs += [w_spec(3 * D), b_spec(3 * D), w_spec(D), b_spec(D)]
        inputs += [wqkv, bqkv, params["wo"], params["bo"].reshape(1, D)]
        kernel = functools.partial(
            _mha_self_kernel, h=h, has_mask=has_mask, d_model=D)
    else:
        in_specs = [x_spec, x_spec, x_spec]
        inputs = [query, key, value]
        if has_mask:
            in_specs.append(mask_spec)
            inputs.append(mask)
        in_specs += [w_spec(D), b_spec(D)] * 4
        inputs += [params["wq"], params["bq"].reshape(1, D),
                   params["wk"], params["bk"].reshape(1, D),
                   params["wv"], params["bv"].reshape(1, D),
                   params["wo"], params["bo"].reshape(1, D)]
        kernel = functools.partial(
            _mha_general_kernel, h=h, has_mask=has_mask, d_model=D)

    return pl.pallas_call(
        kernel,
        out_shape=jax.ShapeDtypeStruct((B, S, D), query.dtype),
        grid=(B,),
        in_specs=in_specs,
        out_specs=x_spec,
        compiler_params=pltpu.CompilerParams(dimension_semantics=("parallel",)),
    )(*inputs)


# ---------------------------------------------------------------------------
# Deterministic parameter init (mirrors nn.Linear(d_model, d_model) x 4)
# ---------------------------------------------------------------------------
def init_params(key, d_model):
    keys = jax.random.split(key, 8)
    bound = 1.0 / math.sqrt(d_model)

    def lin(kw, kb):
        # stored already transposed: [Din, Dout] so y = x @ w + b
        w = jax.random.uniform(kw, (d_model, d_model), jnp.float32, -bound, bound)
        b = jax.random.uniform(kb, (d_model,), jnp.float32, -bound, bound)
        return w, b

    wq, bq = lin(keys[0], keys[1])
    wk, bk = lin(keys[2], keys[3])
    wv, bv = lin(keys[4], keys[5])
    wo, bo = lin(keys[6], keys[7])
    return dict(wq=wq, bq=bq, wk=wk, bk=bk, wv=wv, bv=bv, wo=wo, bo=bo)


def reference(query, key, value, params, h, mask=None):
    """Pure-JAX reference of the PyTorch forward (eval mode)."""
    B, S, D = query.shape
    d_k = D // h

    def proj(x, w, b):
        y = x.reshape(B * S, D) @ w + b
        return y.reshape(B, S, h, d_k).transpose(0, 2, 1, 3)

    q = proj(query, params["wq"], params["bq"])
    k = proj(key, params["wk"], params["bk"])
    v = proj(value, params["wv"], params["bv"])
    scores = jnp.einsum("bhqd,bhkd->bhqk", q, k) / math.sqrt(d_k)
    if mask is not None:
        m = jnp.asarray(mask).reshape(B, 1, S, S)
        scores = jnp.where(m > 0, scores, -1e9)
    p = jax.nn.softmax(scores, axis=-1)
    ctx = jnp.einsum("bhqk,bhkd->bhqd", p, v)
    ctx = ctx.transpose(0, 2, 1, 3).reshape(B * S, D)
    out = ctx @ params["wo"] + params["bo"]
    return out.reshape(B, S, D)


if __name__ == "__main__":
    B, S, d_model, h = 2, 8, 32, 4

    root = jax.random.PRNGKey(0)
    kp, kq, kk, kv = jax.random.split(root, 4)
    params = init_params(kp, d_model)
    x = jax.random.normal(kq, (B, S, d_model), jnp.float32)
    key_in = jax.random.normal(kk, (B, S, d_model), jnp.float32)
    value = jax.random.normal(kv, (B, S, d_model), jnp.float32)

    # (1) self-attention, mask=None (the actual BERT4Rec call pattern) --------
    out = jax.block_until_ready(multi_headed_attention(x, x, x, params, h))
    ref = reference(x, x, x, params, h)
    assert out.shape == (B, S, d_model)
    assert jnp.allclose(out, ref, atol=2e-3, rtol=2e-3)

    # (2) self-attention with mask: scores.masked_fill(mask == 0, -1e9) -------
    causal = jnp.tril(jnp.ones((S, S), jnp.float32))
    mask = jnp.broadcast_to(causal, (B, 1, S, S))
    out_m = jax.block_until_ready(
        multi_headed_attention(x, x, x, params, h, mask=mask))
    ref_m = reference(x, x, x, params, h, mask=mask)
    assert jnp.allclose(out_m, ref_m, atol=2e-3, rtol=2e-3)

    # (3) general path: distinct query / key / value tensors ------------------
    out_g = jax.block_until_ready(
        multi_headed_attention(x, key_in, value, params, h, mask=mask))
    ref_g = reference(x, key_in, value, params, h, mask=mask)
    assert jnp.allclose(out_g, ref_g, atol=2e-3, rtol=2e-3)

    print("KERNEL_OK")
</pallas_src>

<mosaic_0001>
module attributes {stable_mosaic.version = 11 : i64} {
  func.func @_mha_self_kernel(%arg0: i32, %arg1: memref<1x8x32xf32, #tpu.memory_space<vmem>>, %arg2: memref<32x96xf32, #tpu.memory_space<vmem>>, %arg3: memref<1x96xf32, #tpu.memory_space<vmem>>, %arg4: memref<32x32xf32, #tpu.memory_space<vmem>>, %arg5: memref<1x32xf32, #tpu.memory_space<vmem>>, %arg6: memref<1x8x32xf32, #tpu.memory_space<vmem>>) attributes {dimension_semantics = [#tpu.dimension_semantics<parallel>], iteration_bounds = array<i64: 2>, scalar_prefetch = 0 : i64, scratch_operands = 0 : i64, tpu.core_type = #tpu.core_type<tc>, window_params = [{transform_indices = @transform_0, window_bounds = array<i64: 1, 8, 32>}, {pipeline_mode = #tpu.pipeline_mode<synchronous>, transform_indices = @transform_1, window_bounds = array<i64: 32, 96>}, {pipeline_mode = #tpu.pipeline_mode<synchronous>, transform_indices = @transform_2, window_bounds = array<i64: 1, 96>}, {pipeline_mode = #tpu.pipeline_mode<synchronous>, transform_indices = @transform_3, window_bounds = array<i64: 32, 32>}, {pipeline_mode = #tpu.pipeline_mode<synchronous>, transform_indices = @transform_4, window_bounds = array<i64: 1, 32>}, {transform_indices = @transform_5, window_bounds = array<i64: 1, 8, 32>}]} {
    %c0 = arith.constant 0 : index
    %c0_0 = arith.constant 0 : index
    %c0_1 = arith.constant 0 : index
    %0 = vector.load %arg1[%c0, %c0_0, %c0_1] : memref<1x8x32xf32, #tpu.memory_space<vmem>>, vector<1x8x32xf32>
    %1 = vector.shape_cast %0 : vector<1x8x32xf32> to vector<8x32xf32>
    %c0_2 = arith.constant 0 : index
    %c0_3 = arith.constant 0 : index
    %2 = vector.load %arg2[%c0_2, %c0_3] : memref<32x96xf32, #tpu.memory_space<vmem>>, vector<32x96xf32>
    %cst = arith.constant dense<0.000000e+00> : vector<8x96xf32>
    %3 = tpu.matmul %1, %2, %cst {dimension_numbers = #tpu.dot_dimension_numbers<[1], [0], [0], [1], [0, 0, 1, 1], [], []>} : vector<8x32xf32>, vector<32x96xf32>, vector<8x96xf32> -> vector<8x96xf32>
    %c0_4 = arith.constant 0 : index
    %c0_5 = arith.constant 0 : index
    %4 = vector.load %arg3[%c0_4, %c0_5] : memref<1x96xf32, #tpu.memory_space<vmem>>, vector<1x96xf32>
    %5 = vector.broadcast %4 : vector<1x96xf32> to vector<8x96xf32>
    %6 = arith.addf %3, %5 : vector<8x96xf32>
    %7 = vector.extract_strided_slice %6 {offsets = [0, 0], sizes = [8, 32], strides = [1, 1]} : vector<8x96xf32> to vector<8x32xf32>
    %cst_6 = arith.constant 0.353553385 : f32
    %8 = vector.broadcast %cst_6 : f32 to vector<8x32xf32>
    %9 = arith.mulf %7, %8 : vector<8x32xf32>
    %10 = vector.extract_strided_slice %6 {offsets = [0, 32], sizes = [8, 32], strides = [1, 1]} : vector<8x96xf32> to vector<8x32xf32>
    %11 = vector.extract_strided_slice %6 {offsets = [0, 64], sizes = [8, 32], strides = [1, 1]} : vector<8x96xf32> to vector<8x32xf32>
    %12 = vector.extract_strided_slice %9 {offsets = [0, 0], sizes = [8, 8], strides = [1, 1]} : vector<8x32xf32> to vector<8x8xf32>
    %13 = vector.extract_strided_slice %10 {offsets = [0, 0], sizes = [8, 8], strides = [1, 1]} : vector<8x32xf32> to vector<8x8xf32>
    %14 = vector.extract_strided_slice %11 {offsets = [0, 0], sizes = [8, 8], strides = [1, 1]} : vector<8x32xf32> to vector<8x8xf32>
    %cst_7 = arith.constant dense<0.000000e+00> : vector<8x8xf32>
    %15 = tpu.matmul %12, %13, %cst_7 {dimension_numbers = #tpu.dot_dimension_numbers<[1], [1], [0], [0], [0, 0, 1, 0], [], []>} : vector<8x8xf32>, vector<8x8xf32>, vector<8x8xf32> -> vector<8x8xf32>
    %cst_8 = arith.constant dense<0xFF800000> : vector<8xf32>
    %16 = vector.multi_reduction <maximumf>, %15, %cst_8 [1] : vector<8x8xf32> to vector<8xf32>
    %17 = vector.shape_cast %16 : vector<8xf32> to vector<8x1xf32>
    %18 = vector.broadcast %17 : vector<8x1xf32> to vector<8x8xf32>
    %19 = arith.subf %15, %18 : vector<8x8xf32>
    %20 = math.exp %19 : vector<8x8xf32>
    %cst_9 = arith.constant dense<0.000000e+00> : vector<8xf32>
    %21 = vector.multi_reduction <add>, %20, %cst_9 [1] : vector<8x8xf32> to vector<8xf32>
    %22 = vector.shape_cast %21 : vector<8xf32> to vector<8x1xf32>
    %23 = tpu.reciprocal %22 {approx = true} : vector<8x1xf32> -> vector<8x1xf32>
    %24 = vector.broadcast %23 : vector<8x1xf32> to vector<8x8xf32>
    %25 = arith.mulf %20, %24 : vector<8x8xf32>
    %cst_10 = arith.constant dense<0.000000e+00> : vector<8x8xf32>
    %26 = tpu.matmul %25, %14, %cst_10 {dimension_numbers = #tpu.dot_dimension_numbers<[1], [0], [0], [1], [0, 0, 1, 1], [], []>} : vector<8x8xf32>, vector<8x8xf32>, vector<8x8xf32> -> vector<8x8xf32>
    %27 = vector.extract_strided_slice %9 {offsets = [0, 8], sizes = [8, 8], strides = [1, 1]} : vector<8x32xf32> to vector<8x8xf32>
    %28 = vector.extract_strided_slice %10 {offsets = [0, 8], sizes = [8, 8], strides = [1, 1]} : vector<8x32xf32> to vector<8x8xf32>
    %29 = vector.extract_strided_slice %11 {offsets = [0, 8], sizes = [8, 8], strides = [1, 1]} : vector<8x32xf32> to vector<8x8xf32>
    %cst_11 = arith.constant dense<0.000000e+00> : vector<8x8xf32>
    %30 = tpu.matmul %27, %28, %cst_11 {dimension_numbers = #tpu.dot_dimension_numbers<[1], [1], [0], [0], [0, 0, 1, 0], [], []>} : vector<8x8xf32>, vector<8x8xf32>, vector<8x8xf32> -> vector<8x8xf32>
    %cst_12 = arith.constant dense<0xFF800000> : vector<8xf32>
    %31 = vector.multi_reduction <maximumf>, %30, %cst_12 [1] : vector<8x8xf32> to vector<8xf32>
    %32 = vector.shape_cast %31 : vector<8xf32> to vector<8x1xf32>
    %33 = vector.broadcast %32 : vector<8x1xf32> to vector<8x8xf32>
    %34 = arith.subf %30, %33 : vector<8x8xf32>
    %35 = math.exp %34 : vector<8x8xf32>
    %cst_13 = arith.constant dense<0.000000e+00> : vector<8xf32>
    %36 = vector.multi_reduction <add>, %35, %cst_13 [1] : vector<8x8xf32> to vector<8xf32>
    %37 = vector.shape_cast %36 : vector<8xf32> to vector<8x1xf32>
    %38 = tpu.reciprocal %37 {approx = true} : vector<8x1xf32> -> vector<8x1xf32>
    %39 = vector.broadcast %38 : vector<8x1xf32> to vector<8x8xf32>
    %40 = arith.mulf %35, %39 : vector<8x8xf32>
    %cst_14 = arith.constant dense<0.000000e+00> : vector<8x8xf32>
    %41 = tpu.matmul %40, %29, %cst_14 {dimension_numbers = #tpu.dot_dimension_numbers<[1], [0], [0], [1], [0, 0, 1, 1], [], []>} : vector<8x8xf32>, vector<8x8xf32>, vector<8x8xf32> -> vector<8x8xf32>
    %42 = vector.extract_strided_slice %9 {offsets = [0, 16], sizes = [8, 8], strides = [1, 1]} : vector<8x32xf32> to vector<8x8xf32>
    %43 = vector.extract_strided_slice %10 {offsets = [0, 16], sizes = [8, 8], strides = [1, 1]} : vector<8x32xf32> to vector<8x8xf32>
    %44 = vector.extract_strided_slice %11 {offsets = [0, 16], sizes = [8, 8], strides = [1, 1]} : vector<8x32xf32> to vector<8x8xf32>
    %cst_15 = arith.constant dense<0.000000e+00> : vector<8x8xf32>
    %45 = tpu.matmul %42, %43, %cst_15 {dimension_numbers = #tpu.dot_dimension_numbers<[1], [1], [0], [0], [0, 0, 1, 0], [], []>} : vector<8x8xf32>, vector<8x8xf32>, vector<8x8xf32> -> vector<8x8xf32>
    %cst_16 = arith.constant dense<0xFF800000> : vector<8xf32>
    %46 = vector.multi_reduction <maximumf>, %45, %cst_16 [1] : vector<8x8xf32> to vector<8xf32>
    %47 = vector.shape_cast %46 : vector<8xf32> to vector<8x1xf32>
    %48 = vector.broadcast %47 : vector<8x1xf32> to vector<8x8xf32>
    %49 = arith.subf %45, %48 : vector<8x8xf32>
    %50 = math.exp %49 : vector<8x8xf32>
    %cst_17 = arith.constant dense<0.000000e+00> : vector<8xf32>
    %51 = vector.multi_reduction <add>, %50, %cst_17 [1] : vector<8x8xf32> to vector<8xf32>
    %52 = vector.shape_cast %51 : vector<8xf32> to vector<8x1xf32>
    %53 = tpu.reciprocal %52 {approx = true} : vector<8x1xf32> -> vector<8x1xf32>
    %54 = vector.broadcast %53 : vector<8x1xf32> to vector<8x8xf32>
    %55 = arith.mulf %50, %54 : vector<8x8xf32>
    %cst_18 = arith.constant dense<0.000000e+00> : vector<8x8xf32>
    %56 = tpu.matmul %55, %44, %cst_18 {dimension_numbers = #tpu.dot_dimension_numbers<[1], [0], [0], [1], [0, 0, 1, 1], [], []>} : vector<8x8xf32>, vector<8x8xf32>, vector<8x8xf32> -> vector<8x8xf32>
    %57 = vector.extract_strided_slice %9 {offsets = [0, 24], sizes = [8, 8], strides = [1, 1]} : vector<8x32xf32> to vector<8x8xf32>
    %58 = vector.extract_strided_slice %10 {offsets = [0, 24], sizes = [8, 8], strides = [1, 1]} : vector<8x32xf32> to vector<8x8xf32>
    %59 = vector.extract_strided_slice %11 {offsets = [0, 24], sizes = [8, 8], strides = [1, 1]} : vector<8x32xf32> to vector<8x8xf32>
    %cst_19 = arith.constant dense<0.000000e+00> : vector<8x8xf32>
    %60 = tpu.matmul %57, %58, %cst_19 {dimension_numbers = #tpu.dot_dimension_numbers<[1], [1], [0], [0], [0, 0, 1, 0], [], []>} : vector<8x8xf32>, vector<8x8xf32>, vector<8x8xf32> -> vector<8x8xf32>
    %cst_20 = arith.constant dense<0xFF800000> : vector<8xf32>
    %61 = vector.multi_reduction <maximumf>, %60, %cst_20 [1] : vector<8x8xf32> to vector<8xf32>
    %62 = vector.shape_cast %61 : vector<8xf32> to vector<8x1xf32>
    %63 = vector.broadcast %62 : vector<8x1xf32> to vector<8x8xf32>
    %64 = arith.subf %60, %63 : vector<8x8xf32>
    %65 = math.exp %64 : vector<8x8xf32>
    %cst_21 = arith.constant dense<0.000000e+00> : vector<8xf32>
    %66 = vector.multi_reduction <add>, %65, %cst_21 [1] : vector<8x8xf32> to vector<8xf32>
    %67 = vector.shape_cast %66 : vector<8xf32> to vector<8x1xf32>
    %68 = tpu.reciprocal %67 {approx = true} : vector<8x1xf32> -> vector<8x1xf32>
    %69 = vector.broadcast %68 : vector<8x1xf32> to vector<8x8xf32>
    %70 = arith.mulf %65, %69 : vector<8x8xf32>
    %cst_22 = arith.constant dense<0.000000e+00> : vector<8x8xf32>
    %71 = tpu.matmul %70, %59, %cst_22 {dimension_numbers = #tpu.dot_dimension_numbers<[1], [0], [0], [1], [0, 0, 1, 1], [], []>} : vector<8x8xf32>, vector<8x8xf32>, vector<8x8xf32> -> vector<8x8xf32>
    %72 = tpu.concatenate %26, %41, %56, %71 in 1 : vector<8x8xf32>, vector<8x8xf32>, vector<8x8xf32>, vector<8x8xf32> -> vector<8x32xf32>
    %c0_23 = arith.constant 0 : index
    %c0_24 = arith.constant 0 : index
    %73 = vector.load %arg4[%c0_23, %c0_24] : memref<32x32xf32, #tpu.memory_space<vmem>>, vector<32x32xf32>
    %cst_25 = arith.constant dense<0.000000e+00> : vector<8x32xf32>
    %74 = tpu.matmul %72, %73, %cst_25 {dimension_numbers = #tpu.dot_dimension_numbers<[1], [0], [0], [1], [0, 0, 1, 1], [], []>} : vector<8x32xf32>, vector<32x32xf32>, vector<8x32xf32> -> vector<8x32xf32>
    %c0_26 = arith.constant 0 : index
    %c0_27 = arith.constant 0 : index
    %75 = vector.load %arg5[%c0_26, %c0_27] : memref<1x32xf32, #tpu.memory_space<vmem>>, vector<1x32xf32>
    %76 = vector.broadcast %75 : vector<1x32xf32> to vector<8x32xf32>
    %77 = arith.addf %74, %76 : vector<8x32xf32>
    %c0_28 = arith.constant 0 : index
    %c0_29 = arith.constant 0 : index
    %c0_30 = arith.constant 0 : index
    %78 = vector.load %arg6[%c0_28, %c0_29, %c0_30] : memref<1x8x32xf32, #tpu.memory_space<vmem>>, vector<1x8x32xf32>
    %79 = vector.shape_cast %78 : vector<1x8x32xf32> to vector<8x32xf32>
    %80 = vector.shape_cast %77 : vector<8x32xf32> to vector<1x8x32xf32>
    tpu.vector_store %arg6[%c0_28, %c0_29, %c0_30], %80 {strides = array<i32>} : memref<1x8x32xf32, #tpu.memory_space<vmem>>, vector<1x8x32xf32>,
    return
  }
  func.func @transform_0(%arg0: i32) -> (i32, i32, i32) {
    %c0_i32 = arith.constant 0 : i32
    %c0_i32_0 = arith.constant 0 : i32
    %c0_i32_1 = arith.constant 0 : i32
    return %arg0, %c0_i32, %c0_i32_0 : i32, i32, i32
  }
  func.func @transform_1(%arg0: i32) -> (i32, i32) {
    %c0_i32 = arith.constant 0 : i32
    %c0_i32_0 = arith.constant 0 : i32
    %c0_i32_1 = arith.constant 0 : i32
    return %c0_i32, %c0_i32_0 : i32, i32
  }
  func.func @transform_2(%arg0: i32) -> (i32, i32) {
    %c0_i32 = arith.constant 0 : i32
    %c0_i32_0 = arith.constant 0 : i32
    %c0_i32_1 = arith.constant 0 : i32
    return %c0_i32, %c0_i32_0 : i32, i32
  }
  func.func @transform_3(%arg0: i32) -> (i32, i32) {
    %c0_i32 = arith.constant 0 : i32
    %c0_i32_0 = arith.constant 0 : i32
    %c0_i32_1 = arith.constant 0 : i32
    return %c0_i32, %c0_i32_0 : i32, i32
  }
  func.func @transform_4(%arg0: i32) -> (i32, i32) {
    %c0_i32 = arith.constant 0 : i32
    %c0_i32_0 = arith.constant 0 : i32
    %c0_i32_1 = arith.constant 0 : i32
    return %c0_i32, %c0_i32_0 : i32, i32
  }
  func.func @transform_5(%arg0: i32) -> (i32, i32, i32) {
    %c0_i32 = arith.constant 0 : i32
    %c0_i32_0 = arith.constant 0 : i32
    %c0_i32_1 = arith.constant 0 : i32
    return %arg0, %c0_i32, %c0_i32_0 : i32, i32, i32
  }
}

</mosaic_0001>

<llo_original>
// kernel: tpu_custom_call.1
$region0: #{tpu_custom_call.1}
  #allocation0 [shape = 'u32[]', space=smem, size = 0x4, offset = 0x4, fixed_abs, tag = 'smem constant byte address 0x4 - core index']
  #allocation1 [shape = 'u32[72,128]{1,0:T(1,128)}', space=vmem, size = 0x9000, scoped, tag = 'internal scratch']
  %s0 = inlined_call_operand.hbm [shape: f32[2,8,32], index: 0, kind: input, shape index: {}]
  %s1 = inlined_call_operand.hbm [shape: f32[32,96], index: 1, kind: input, shape index: {}]
  %s2 = inlined_call_operand.vmem [shape: f32[1,96], index: 2, kind: input, shape index: {}]
  %s3 = inlined_call_operand.hbm [shape: f32[32,32], index: 3, kind: input, shape index: {}]
  %s4 = inlined_call_operand.vmem [shape: f32[1,32], index: 4, kind: input, shape index: {}]
  %s5 = inlined_call_operand.hbm [shape: f32[2,8,32], index: 5, kind: output, shape index: {}]
  %s6 = sld [smem:[#allocation0]]
  $region65: #{tpu_custom_call.1} parent=0
    _
  %s8 = ssub.s32 1, %s6
  %s9 = scalar_select 0, %s8, %s6
  $region1: #{tpu_custom_call.1} parent=0
    #allocation2 [shape = 'u8[8192]{0}', space=vmem, size = 0x2000, scoped, tag = 'input window, operand 0']
    #allocation3 [shape = 's32[2]{0}', space=sflag, size = 0x8, scoped, tag = 'scoped memory for tpu_custom_call.1']
    #allocation4 [shape = 's32[2]{0}', space=sflag, size = 0x8, scoped, tag = 'scoped memory for tpu_custom_call.1']
    #allocation5 [shape = 'u8[16384]{0}', space=vmem, size = 0x4000, scoped, tag = 'input window, operand 1, single buffered']
    #allocation6 [shape = 's32[1]{0}', space=sflag, size = 0x4, scoped, tag = 'scoped memory for tpu_custom_call.1']
    #allocation7 [shape = 'u8[16384]{0}', space=vmem, size = 0x4000, scoped, tag = 'input window, operand 3, single buffered']
    #allocation8 [shape = 'u8[8192]{0}', space=vmem, size = 0x2000, scoped, tag = 'output window, operand 0']
    %10 = vsyncpa [#allocation3], 0
    %s11 = scalar_lea.sflag [#allocation3], 1
    %12 = vsyncpa %s11, 0
    %13 = vsyncpa [#allocation6], 0
    %14 = vsyncpa [#allocation4], 0
    %s15 = scalar_lea.sflag [#allocation4], 1
    %16 = vsyncpa %s15, 0
    loop: start=0, step=1, limit=4
    $region2: #{tpu_custom_call.1} parent=1 // loop_pre_header
      _
    $region3: #{tpu_custom_call.1} parent=1 // loop_header
      %s18 = sphi 0, %s22
      %p19 = scmp.ge.s32.totalorder %s18, 4
      %s28 = sphi 0, %s30
      %s31 = sphi 0, %s28
      %s32 = sphi 0, %s31
      %s48 = sphi 0, %s32
      %s52 = sphi 0, %s52
      %s54 = sphi 0, %s52
      %s55 = sphi 0, %s54
      %s69 = sphi 0, %s55
      %s73 = sphi 0, %s73
      %s75 = sphi 0, %s73
      %s76 = sphi 0, %s75
      %s90 = sphi 0, %s76
      %s94 = sphi 0, %s94
      %s96 = sphi 0, %s94
      %s97 = sphi 0, %s96
      %s111 = sphi 0, %s97
      %s115 = sphi 0, %s115
      %s117 = sphi 0, %s115
      %s118 = sphi 0, %s117
      %s132 = sphi 0, %s118
      %s138 = sphi 0, %s140
      %s141 = sphi 0, %s138
      %s142 = sphi 0, %s141
      %s158 = sphi 0, %s142
    $region4: #{tpu_custom_call.1} parent=1 // loop_header_branch
      %21 = sbr.rel (%p19) target = $region8
    $region5: #{tpu_custom_call.1} parent=1 // loop_body
      %s23 = ssub.s32 %s18, 1
      %s24 = ssub.s32 %s18, 2
      %s25 = sadd.s32 %s18, 1
      %s26 = ssub.s32 %s18, %s25
      %p27 = scmp.eq.s32.totalorder %s26, 0
      %s29 = sadd.s32 %s28, 1
      %s30 = scalar_select %p27, %s28, %s29
      %p33 = pneg %p27
      %p34 = scmp.eq.s32.totalorder %s18, 1
      %p35 = por %p33, %p34
      %p36 = scmp.ne.s32.totalorder %s28, %s31
      %p37 = scmp.eq.s32.totalorder %s18, 0
      %p38 = por %p36, %p37
      %p39 = scmp.ne.s32.totalorder %s28, %s31
      %p40 = scmp.eq.s32.totalorder %s23, 1
      %p41 = por %p39, %p40
      %p42 = scmp.ne.s32.totalorder %s31, %s32
      %p43 = scmp.eq.s32.totalorder %s23, 0
      %p44 = por %p42, %p43
      %p45 = scmp.ne.s32.totalorder %s31, %s32
      %p46 = scmp.eq.s32.totalorder %s24, 1
      %p47 = por %p45, %p46
      %p49 = scmp.ne.s32.totalorder %s32, %s48
      %p50 = scmp.eq.s32.totalorder %s24, 0
      %p51 = por %p49, %p50
      %s53 = sadd.s32 %s52, 1
      %p56 = scmp.eq.s32.totalorder %s18, 1
      %p57 = scmp.ne.s32.totalorder %s52, %s54
      %p58 = scmp.eq.s32.totalorder %s18, 0
      %p59 = por %p57, %p58
      %p60 = scmp.ne.s32.totalorder %s52, %s54
      %p61 = scmp.eq.s32.totalorder %s23, 1
      %p62 = por %p60, %p61
      %p63 = scmp.ne.s32.totalorder %s54, %s55
      %p64 = scmp.eq.s32.totalorder %s23, 0
      %p65 = por %p63, %p64
      %p66 = scmp.ne.s32.totalorder %s54, %s55
      %p67 = scmp.eq.s32.totalorder %s24, 1
      %p68 = por %p66, %p67
      %p70 = scmp.ne.s32.totalorder %s55, %s69
      %p71 = scmp.eq.s32.totalorder %s24, 0
      %p72 = por %p70, %p71
      %s74 = sadd.s32 %s73, 1
      %p77 = scmp.eq.s32.totalorder %s18, 1
      %p78 = scmp.ne.s32.totalorder %s73, %s75
      %p79 = scmp.eq.s32.totalorder %s18, 0
      %p80 = por %p78, %p79
      %p81 = scmp.ne.s32.totalorder %s73, %s75
      %p82 = scmp.eq.s32.totalorder %s23, 1
      %p83 = por %p81, %p82
      %p84 = scmp.ne.s32.totalorder %s75, %s76
      %p85 = scmp.eq.s32.totalorder %s23, 0
      %p86 = por %p84, %p85
      %p87 = scmp.ne.s32.totalorder %s75, %s76
      %p88 = scmp.eq.s32.totalorder %s24, 1
      %p89 = por %p87, %p88
      %p91 = scmp.ne.s32.totalorder %s76, %s90
      %p92 = scmp.eq.s32.totalorder %s24, 0
      %p93 = por %p91, %p92
      %s95 = sadd.s32 %s94, 1
      %p98 = scmp.eq.s32.totalorder %s18, 1
      %p99 = scmp.ne.s32.totalorder %s94, %s96
      %p100 = scmp.eq.s32.totalorder %s18, 0
      %p101 = por %p99, %p100
      %p102 = scmp.ne.s32.totalorder %s94, %s96
      %p103 = scmp.eq.s32.totalorder %s23, 1
      %p104 = por %p102, %p103
      %p105 = scmp.ne.s32.totalorder %s96, %s97
      %p106 = scmp.eq.s32.totalorder %s23, 0
      %p107 = por %p105, %p106
      %p108 = scmp.ne.s32.totalorder %s96, %s97
      %p109 = scmp.eq.s32.totalorder %s24, 1
      %p110 = por %p108, %p109
      %p112 = scmp.ne.s32.totalorder %s97, %s111
      %p113 = scmp.eq.s32.totalorder %s24, 0
      %p114 = por %p112, %p113
      %s116 = sadd.s32 %s115, 1
      %p119 = scmp.eq.s32.totalorder %s18, 1
      %p120 = scmp.ne.s32.totalorder %s115, %s117
      %p121 = scmp.eq.s32.totalorder %s18, 0
      %p122 = por %p120, %p121
      %p123 = scmp.ne.s32.totalorder %s115, %s117
      %p124 = scmp.eq.s32.totalorder %s23, 1
      %p125 = por %p123, %p124
      %p126 = scmp.ne.s32.totalorder %s117, %s118
      %p127 = scmp.eq.s32.totalorder %s23, 0
      %p128 = por %p126, %p127
      %p129 = scmp.ne.s32.totalorder %s117, %s118
      %p130 = scmp.eq.s32.totalorder %s24, 1
      %p131 = por %p129, %p130
      %p133 = scmp.ne.s32.totalorder %s118, %s132
      %p134 = scmp.eq.s32.totalorder %s24, 0
      %p135 = por %p133, %p134
      %s136 = ssub.s32 %s18, %s25
      %p137 = scmp.eq.s32.totalorder %s136, 0
      %s139 = sadd.s32 %s138, 1
      %s140 = scalar_select %p137, %s138, %s139
      %p143 = pneg %p137
      %p144 = scmp.eq.s32.totalorder %s18, 1
      %p145 = por %p143, %p144
      %p146 = scmp.ne.s32.totalorder %s138, %s141
      %p147 = scmp.eq.s32.totalorder %s18, 0
      %p148 = por %p146, %p147
      %p149 = scmp.ne.s32.totalorder %s138, %s141
      %p150 = scmp.eq.s32.totalorder %s23, 1
      %p151 = por %p149, %p150
      %p152 = scmp.ne.s32.totalorder %s141, %s142
      %p153 = scmp.eq.s32.totalorder %s23, 0
      %p154 = por %p152, %p153
      %p155 = scmp.ne.s32.totalorder %s141, %s142
      %p156 = scmp.eq.s32.totalorder %s24, 1
      %p157 = por %p155, %p156
      %p159 = scmp.ne.s32.totalorder %s142, %s158
      %p160 = scmp.eq.s32.totalorder %s24, 0
      %p161 = por %p159, %p160
      %p162 = scmp.le.s32.totalorder 1, %s18
      %p163 = scmp.lt.s32.totalorder %s18, 3
      %p164 = pnand %p162, %p163
      %p165 = pneg %p164
      // Predicated region
      $region9: #{tpu_custom_call.1} parent=5 // pred_check
        _
      $region10: #{tpu_custom_call.1} parent=5 // pred_check_branch
        %167 = sbr.rel (%p164) target = $region12
      $region11: #{tpu_custom_call.1} parent=5 // pred_region
        %s168 = ssub.s32 %s18, 1
        // Predicated region
        $region13: #{tpu_custom_call.1} parent=11 // pred_check
          %p169 = pneg %p65
        $region14: #{tpu_custom_call.1} parent=11 // pred_check_branch
          %171 = sbr.rel (%p169) target = $region16
        $region15: #{tpu_custom_call.1} parent=11 // pred_region
          %173 = vsyncadd [#allocation6], 0
          %s174 = sshll.u32 %s1, 4
          %s175 = int_to_ptr.hbm [resolvable:$true] %s174
          %s176 = sshll.u32 [#allocation5], 4
          %s177 = int_to_ptr.vmem [resolvable:$true] %s176
          %182 = dma.hbm_to_vmem [thread:$0]  %s175, 512, %s177, [#allocation6], 128, 128, 8
        $region16: #{tpu_custom_call.1} parent=11 // pred_fallthru
          _
        // Predicated region
        $region17: #{tpu_custom_call.1} parent=11 // pred_check
          %p183 = pneg %p86
        $region18: #{tpu_custom_call.1} parent=11 // pred_check_branch
          %185 = sbr.rel (%p183) target = $region20
        $region19: #{tpu_custom_call.1} parent=11 // pred_region
          _
        $region20: #{tpu_custom_call.1} parent=11 // pred_fallthru
          _
        // Predicated region
        $region21: #{tpu_custom_call.1} parent=11 // pred_check
          %p186 = pneg %p107
        $region22: #{tpu_custom_call.1} parent=11 // pred_check_branch
          %188 = sbr.rel (%p186) target = $region24
        $region23: #{tpu_custom_call.1} parent=11 // pred_region
          %190 = vsyncadd [#allocation6], 0
          %s191 = sshll.u32 %s3, 4
          %s192 = int_to_ptr.hbm [resolvable:$true] %s191
          %s193 = sshll.u32 [#allocation7], 4
          %s194 = int_to_ptr.vmem [resolvable:$true] %s193
          %199 = dma.hbm_to_vmem [thread:$0]  %s192, 512, %s194, [#allocation6], 128, 128, 8
        $region24: #{tpu_custom_call.1} parent=11 // pred_fallthru
          _
        // Predicated region
        $region25: #{tpu_custom_call.1} parent=11 // pred_check
          %p200 = pneg %p128
        $region26: #{tpu_custom_call.1} parent=11 // pred_check_branch
          %202 = sbr.rel (%p200) target = $region28
        $region27: #{tpu_custom_call.1} parent=11 // pred_region
          _
        $region28: #{tpu_custom_call.1} parent=11 // pred_fallthru
          _
      $region12: #{tpu_custom_call.1} parent=5 // pred_fallthru
        _
      %p203 = scmp.lt.s32.totalorder %s18, 2
      // Predicated region
      $region29: #{tpu_custom_call.1} parent=5 // pred_check
        %p204 = pneg %p203
      $region30: #{tpu_custom_call.1} parent=5 // pred_check_branch
        %206 = sbr.rel (%p204) target = $region32
      $region31: #{tpu_custom_call.1} parent=5 // pred_region
        // Predicated region
        $region33: #{tpu_custom_call.1} parent=31 // pred_check
          %p207 = pneg %p38
        $region34: #{tpu_custom_call.1} parent=31 // pred_check_branch
          %209 = sbr.rel (%p207) target = $region36
        $region35: #{tpu_custom_call.1} parent=31 // pred_region
          %s210 = sand.u32 %s28, 1
          %s211 = scalar_lea.sflag [#allocation3], %s210
          %s212 = sand.u32 %s28, 1
          %s213 = smul.addr %s212, 8
          %s214 = scalar_lea.vmem [#allocation2], %s213
          %216 = vsyncadd %s211, 0
          %s217 = smul.addr %s18, 8
          %s218 = scalar_lea.hbm %s0, %s217
          %s220 = sshll.u32 %s218, 4
          %s221 = int_to_ptr.hbm [resolvable:$true] %s220
          %s222 = sshll.u32 %s214, 4
          %s223 = int_to_ptr.vmem [resolvable:$true] %s222
          %225 = dma.hbm_to_vmem [thread:$0]  %s221, 128, %s223, %s211
        $region36: #{tpu_custom_call.1} parent=31 // pred_fallthru
          _
      $region32: #{tpu_custom_call.1} parent=5 // pred_fallthru
        _
      %p226 = scmp.le.s32.totalorder 1, %s18
      %p227 = scmp.lt.s32.totalorder %s18, 3
      %p228 = pnand %p226, %p227
      %p229 = pneg %p228
      // Predicated region
      $region37: #{tpu_custom_call.1} parent=5 // pred_check
        _
      $region38: #{tpu_custom_call.1} parent=5 // pred_check_branch
        %231 = sbr.rel (%p228) target = $region40
      $region39: #{tpu_custom_call.1} parent=5 // pred_region
        %s232 = ssub.s32 %s18, 1
        %s233 = sand.u32 %s31, 1
        %s234 = scalar_lea.sflag [#allocation3], %s233
        %s235 = sand.u32 %s31, 1
        %s236 = smul.addr %s235, 8
        %s237 = scalar_lea.vmem [#allocation2], %s236
        // Predicated region
        $region41: #{tpu_custom_call.1} parent=39 // pred_check
          %p238 = pneg %p44
        $region42: #{tpu_custom_call.1} parent=39 // pred_check_branch
          %240 = sbr.rel (%p238) target = $region44
        $region43: #{tpu_custom_call.1} parent=39 // pred_region
          %242 = dma.done %s234, 128
        $region44: #{tpu_custom_call.1} parent=39 // pred_fallthru
          _
        // Predicated region
        $region45: #{tpu_custom_call.1} parent=39 // pred_check
          %p243 = pneg %p65
        $region46: #{tpu_custom_call.1} parent=39 // pred_check_branch
          %245 = sbr.rel (%p243) target = $region48
        $region47: #{tpu_custom_call.1} parent=39 // pred_region
          %247 = dma.done [#allocation6], 512
        $region48: #{tpu_custom_call.1} parent=39 // pred_fallthru
          _
        // Predicated region
        $region49: #{tpu_custom_call.1} parent=39 // pred_check
          %p248 = pneg %p107
        $region50: #{tpu_custom_call.1} parent=39 // pred_check_branch
          %250 = sbr.rel (%p248) target = $region52
        $region51: #{tpu_custom_call.1} parent=39 // pred_region
          %252 = dma.done [#allocation6], 512
        $region52: #{tpu_custom_call.1} parent=39 // pred_fallthru
          _
        %s253 = sand.u32 %s31, 1
        %s254 = scalar_lea.sflag [#allocation3], %s253
        %s255 = sand.u32 %s31, 1
        %s256 = smul.addr %s255, 8
        %s257 = scalar_lea.vmem [#allocation2], %s256
        %p258 = pneg %p44
        %p259 = pneg %p41
        %p260 = pneg %p65
        %p261 = pneg %p62
        %p262 = pneg %p86
        %p263 = pneg %p83
        %p264 = pneg %p107
        %p265 = pneg %p104
        %p266 = pneg %p128
        %p267 = pneg %p125
        %p268 = pneg %p154
        %p269 = pneg %p151
        %s270 = sand.u32 %s141, 1
        %s271 = scalar_lea.sflag [#allocation4], %s270
        %s272 = sand.u32 %s141, 1
        %s273 = smul.addr %s272, 8
        %s274 = scalar_lea.vmem [#allocation8], %s273
        %v275 = vld [vmem:[%s237] sm:$0xff]
        %v276 = vld [vmem:[#allocation5] sm:$0xff]
        %v277 = vld [vmem:[#allocation5 + $0x8] sm:$0xff]
        %v278 = vld [vmem:[#allocation5 + $0x10] sm:$0xff]
        %v279 = vld [vmem:[#allocation5 + $0x18] sm:$0xff]
        %v280 = vld [vmem:[%s2] sm:$0x1]
        %v282 = vperm.slane %v280, 0
        %vm284 = vcmask 261120
        %v286 = vsel %vm284, %v275, 0
        %288 = vmatpush.msra.mxu0 0.0
        %289 = vmatpush.msra.mxu0 0.0
        %290 = vmatpush.msra.mxu0 0.0
        %291 = vmatpush.msra.mxu0 0.0
        %292 = vmatpush.msra.mxu0 0.0
        %293 = vmatpush.msra.mxu0 0.0
        %294 = vmatpush.msra.mxu0 0.0
        %295 = vmatpush.msra.mxu0 0.0
        %296 = vmatpush.msra.mxu0 0.0
        %297 = vmatpush.msra.mxu0 0.0
        %298 = vmatpush.msra.mxu0 0.0
        %299 = vmatpush.msra.mxu0 0.0
        %300 = vmatpush.msra.mxu0 %v279
        %301 = vmatpush.msra.mxu0 %v278
        %302 = vmatpush.msra.mxu0 %v277
        %303 = vmatpush.msra.mxu0 %v276
        %304 = vmatmul.f32.gmra.mxu0 %v286
        %v305 = vpop.f32.mrf.mxu0
        %v306 = vadd.f32 %v282, %v305
        %307 = vdwg.mxu0
        %v308 = vmul.f32 %v306, 0.35355338
        %310 = vrot.lane.b32.xlu0 %v306, 96
        %v311 = vpop.permute.xlu0 %310
        %vm312 = vcmask 64512
        %v314 = vsel %vm312, %v308, 0
        %v316 = vsel %vm312, %v311, 0
        %318 = vmatpush.xpose.msra.mxu0 0.0
        %319 = vmatpush.xpose.msra.mxu0 0.0
        %320 = vmatpush.xpose.msra.mxu0 0.0
        %321 = vmatpush.xpose.msra.mxu0 0.0
        %322 = vmatpush.xpose.msra.mxu0 0.0
        %323 = vmatpush.xpose.msra.mxu0 0.0
        %324 = vmatpush.xpose.msra.mxu0 0.0
        %325 = vmatpush.xpose.msra.mxu0 0.0
        %326 = vmatpush.xpose.msra.mxu0 0.0
        %327 = vmatpush.xpose.msra.mxu0 0.0
        %328 = vmatpush.xpose.msra.mxu0 0.0
        %329 = vmatpush.xpose.msra.mxu0 0.0
        %330 = vmatpush.xpose.msra.mxu0 0.0
        %331 = vmatpush.xpose.msra.mxu0 0.0
        %332 = vmatpush.xpose.msra.mxu0 0.0
        %333 = vmatpush.xpose.msra.mxu0 %v316
        %334 = vmatmul.f32.gmra.mxu0 %v314
        %v335 = vpop.f32.mrf.mxu0
        %v336 = vadd.f32 0.0, %v335
        %337 = vdwg.mxu0
        %v338 = vsel %vm312, %v336, -inf
        %339 = vmax.xlane.f32.xlu0 %v338
        %v340 = vpop.xlane.xlu0 %339
        %v341 = vsub.f32 %v336, %v340
        %v342 = vmul.f32 %v341, 1.442695
        %v343 = vpow.pop %v342
        %v344 = vsel %vm312, %v343, 0.0
        %345 = vadd.xlane.f32.xlu0 %v344
        %v346 = vpop.xlane.xlu0 %345
        %v347 = vrcp.pop %v346
        %v348 = vmul.f32 %v343, %v347
        %349 = vrot.lane.b32.xlu0 %v306, 64
        %v350 = vpop.permute.xlu0 %349
        %v353 = vsel %vm312, %v348, 0
        %355 = vmatpush.msra.mxu0 0.0
        %356 = vmatpush.msra.mxu0 0.0
        %357 = vmatpush.msra.mxu0 0.0
        %358 = vmatpush.msra.mxu0 0.0
        %359 = vmatpush.msra.mxu0 0.0
        %360 = vmatpush.msra.mxu0 0.0
        %361 = vmatpush.msra.mxu0 0.0
        %362 = vmatpush.msra.mxu0 0.0
        %363 = vmatpush.msra.mxu0 0.0
        %364 = vmatpush.msra.mxu0 0.0
        %365 = vmatpush.msra.mxu0 0.0
        %366 = vmatpush.msra.mxu0 0.0
        %367 = vmatpush.msra.mxu0 0.0
        %368 = vmatpush.msra.mxu0 0.0
        %369 = vmatpush.msra.mxu0 0.0
        %370 = vmatpush.msra.mxu0 %v350
        %371 = vmatmul.f32.gmra.mxu0 %v353
        %v372 = vpop.f32.mrf.mxu0
        %v373 = vadd.f32 0.0, %v372
        %374 = vdwg.mxu0
        %375 = vrot.lane.b32.xlu0 %v308, 120
        %v376 = vpop.permute.xlu0 %375
        %377 = vrot.lane.b32.xlu0 %v306, 88
        %v378 = vpop.permute.xlu0 %377
        %v379 = vsel %vm312, %v376, 0
        %v381 = vsel %vm312, %v378, 0
        %383 = vmatpush.xpose.msra.mxu0 0.0
        %384 = vmatpush.xpose.msra.mxu0 0.0
        %385 = vmatpush.xpose.msra.mxu0 0.0
        %386 = vmatpush.xpose.msra.mxu0 0.0
        %387 = vmatpush.xpose.msra.mxu0 0.0
        %388 = vmatpush.xpose.msra.mxu0 0.0
        %389 = vmatpush.xpose.msra.mxu0 0.0
        %390 = vmatpush.xpose.msra.mxu0 0.0
        %391 = vmatpush.xpose.msra.mxu0 0.0
        %392 = vmatpush.xpose.msra.mxu0 0.0
        %393 = vmatpush.xpose.msra.mxu0 0.0
        %394 = vmatpush.xpose.msra.mxu0 0.0
        %395 = vmatpush.xpose.msra.mxu0 0.0
        %396 = vmatpush.xpose.msra.mxu0 0.0
        %397 = vmatpush.xpose.msra.mxu0 0.0
        %398 = vmatpush.xpose.msra.mxu0 %v381
        %399 = vmatmul.f32.gmra.mxu0 %v379
        %v400 = vpop.f32.mrf.mxu0
        %v401 = vadd.f32 0.0, %v400
        %402 = vdwg.mxu0
        %v403 = vsel %vm312, %v401, -inf
        %404 = vmax.xlane.f32.xlu0 %v403
        %v405 = vpop.xlane.xlu0 %404
        %v406 = vsub.f32 %v401, %v405
        %v407 = vmul.f32 %v406, 1.442695
        %v408 = vpow.pop %v407
        %v409 = vsel %vm312, %v408, 0.0
        %410 = vadd.xlane.f32.xlu0 %v409
        %v411 = vpop.xlane.xlu0 %410
        %v412 = vrcp.pop %v411
        %v413 = vmul.f32 %v408, %v412
        %414 = vrot.lane.b32.xlu0 %v306, 56
        %v415 = vpop.permute.xlu0 %414
        %v418 = vsel %vm312, %v413, 0
        %420 = vmatpush.msra.mxu0 0.0
        %421 = vmatpush.msra.mxu0 0.0
        %422 = vmatpush.msra.mxu0 0.0
        %423 = vmatpush.msra.mxu0 0.0
        %424 = vmatpush.msra.mxu0 0.0
        %425 = vmatpush.msra.mxu0 0.0
        %426 = vmatpush.msra.mxu0 0.0
        %427 = vmatpush.msra.mxu0 0.0
        %428 = vmatpush.msra.mxu0 0.0
        %429 = vmatpush.msra.mxu0 0.0
        %430 = vmatpush.msra.mxu0 0.0
        %431 = vmatpush.msra.mxu0 0.0
        %432 = vmatpush.msra.mxu0 0.0
        %433 = vmatpush.msra.mxu0 0.0
        %434 = vmatpush.msra.mxu0 0.0
        %435 = vmatpush.msra.mxu0 %v415
        %436 = vmatmul.f32.gmra.mxu0 %v418
        %v437 = vpop.f32.mrf.mxu0
        %v438 = vadd.f32 0.0, %v437
        %439 = vdwg.mxu0
        %440 = vrot.lane.b32.xlu0 %v308, 112
        %v441 = vpop.permute.xlu0 %440
        %442 = vrot.lane.b32.xlu0 %v306, 80
        %v443 = vpop.permute.xlu0 %442
        %v444 = vsel %vm312, %v441, 0
        %v446 = vsel %vm312, %v443, 0
        %448 = vmatpush.xpose.msra.mxu0 0.0
        %449 = vmatpush.xpose.msra.mxu0 0.0
        %450 = vmatpush.xpose.msra.mxu0 0.0
        %451 = vmatpush.xpose.msra.mxu0 0.0
        %452 = vmatpush.xpose.msra.mxu0 0.0
        %453 = vmatpush.xpose.msra.mxu0 0.0
        %454 = vmatpush.xpose.msra.mxu0 0.0
        %455 = vmatpush.xpose.msra.mxu0 0.0
        %456 = vmatpush.xpose.msra.mxu0 0.0
        %457 = vmatpush.xpose.msra.mxu0 0.0
        %458 = vmatpush.xpose.msra.mxu0 0.0
        %459 = vmatpush.xpose.msra.mxu0 0.0
        %460 = vmatpush.xpose.msra.mxu0 0.0
        %461 = vmatpush.xpose.msra.mxu0 0.0
        %462 = vmatpush.xpose.msra.mxu0 0.0
        %463 = vmatpush.xpose.msra.mxu0 %v446
        %464 = vmatmul.f32.gmra.mxu0 %v444
        %v465 = vpop.f32.mrf.mxu0
        %v466 = vadd.f32 0.0, %v465
        %467 = vdwg.mxu0
        %v468 = vsel %vm312, %v466, -inf
        %469 = vmax.xlane.f32.xlu0 %v468
        %v470 = vpop.xlane.xlu0 %469
        %v471 = vsub.f32 %v466, %v470
        %v472 = vmul.f32 %v471, 1.442695
        %v473 = vpow.pop %v472
        %v474 = vsel %vm312, %v473, 0.0
        %475 = vadd.xlane.f32.xlu0 %v474
        %v476 = vpop.xlane.xlu0 %475
        %v477 = vrcp.pop %v476
        %v478 = vmul.f32 %v473, %v477
        %479 = vrot.lane.b32.xlu0 %v306, 48
        %v480 = vpop.permute.xlu0 %479
        %v483 = vsel %vm312, %v478, 0
        %485 = vmatpush.msra.mxu0 0.0
        %486 = vmatpush.msra.mxu0 0.0
        %487 = vmatpush.msra.mxu0 0.0
        %488 = vmatpush.msra.mxu0 0.0
        %489 = vmatpush.msra.mxu0 0.0
        %490 = vmatpush.msra.mxu0 0.0
        %491 = vmatpush.msra.mxu0 0.0
        %492 = vmatpush.msra.mxu0 0.0
        %493 = vmatpush.msra.mxu0 0.0
        %494 = vmatpush.msra.mxu0 0.0
        %495 = vmatpush.msra.mxu0 0.0
        %496 = vmatpush.msra.mxu0 0.0
        %497 = vmatpush.msra.mxu0 0.0
        %498 = vmatpush.msra.mxu0 0.0
        %499 = vmatpush.msra.mxu0 0.0
        %500 = vmatpush.msra.mxu0 %v480
        %501 = vmatmul.f32.gmra.mxu0 %v483
        %v502 = vpop.f32.mrf.mxu0
        %v503 = vadd.f32 0.0, %v502
        %504 = vdwg.mxu0
        %505 = vrot.lane.b32.xlu0 %v308, 104
        %v506 = vpop.permute.xlu0 %505
        %507 = vrot.lane.b32.xlu0 %v306, 72
        %v508 = vpop.permute.xlu0 %507
        %v509 = vsel %vm312, %v506, 0
        %v511 = vsel %vm312, %v508, 0
        %513 = vmatpush.xpose.msra.mxu0 0.0
        %514 = vmatpush.xpose.msra.mxu0 0.0
        %515 = vmatpush.xpose.msra.mxu0 0.0
        %516 = vmatpush.xpose.msra.mxu0 0.0
        %517 = vmatpush.xpose.msra.mxu0 0.0
        %518 = vmatpush.xpose.msra.mxu0 0.0
        %519 = vmatpush.xpose.msra.mxu0 0.0
        %520 = vmatpush.xpose.msra.mxu0 0.0
        %521 = vmatpush.xpose.msra.mxu0 0.0
        %522 = vmatpush.xpose.msra.mxu0 0.0
        %523 = vmatpush.xpose.msra.mxu0 0.0
        %524 = vmatpush.xpose.msra.mxu0 0.0
        %525 = vmatpush.xpose.msra.mxu0 0.0
        %526 = vmatpush.xpose.msra.mxu0 0.0
        %527 = vmatpush.xpose.msra.mxu0 0.0
        %528 = vmatpush.xpose.msra.mxu0 %v511
        %529 = vmatmul.f32.gmra.mxu0 %v509
        %v530 = vpop.f32.mrf.mxu0
        %v531 = vadd.f32 0.0, %v530
        %532 = vdwg.mxu0
        %v533 = vsel %vm312, %v531, -inf
        %534 = vmax.xlane.f32.xlu0 %v533
        %v535 = vpop.xlane.xlu0 %534
        %v536 = vsub.f32 %v531, %v535
        %v537 = vmul.f32 %v536, 1.442695
        %v538 = vpow.pop %v537
        %v539 = vsel %vm312, %v538, 0.0
        %540 = vadd.xlane.f32.xlu0 %v539
        %v541 = vpop.xlane.xlu0 %540
        %v542 = vrcp.pop %v541
        %v543 = vmul.f32 %v538, %v542
        %544 = vrot.lane.b32.xlu0 %v306, 40
        %v545 = vpop.permute.xlu0 %544
        %v548 = vsel %vm312, %v543, 0
        %550 = vmatpush.msra.mxu0 0.0
        %551 = vmatpush.msra.mxu0 0.0
        %552 = vmatpush.msra.mxu0 0.0
        %553 = vmatpush.msra.mxu0 0.0
        %554 = vmatpush.msra.mxu0 0.0
        %555 = vmatpush.msra.mxu0 0.0
        %556 = vmatpush.msra.mxu0 0.0
        %557 = vmatpush.msra.mxu0 0.0
        %558 = vmatpush.msra.mxu0 0.0
        %559 = vmatpush.msra.mxu0 0.0
        %560 = vmatpush.msra.mxu0 0.0
        %561 = vmatpush.msra.mxu0 0.0
        %562 = vmatpush.msra.mxu0 0.0
        %563 = vmatpush.msra.mxu0 0.0
        %564 = vmatpush.msra.mxu0 0.0
        %565 = vmatpush.msra.mxu0 %v545
        %566 = vmatmul.f32.gmra.mxu0 %v548
        %v567 = vpop.f32.mrf.mxu0
        %v568 = vadd.f32 0.0, %v567
        %569 = vdwg.mxu0
        %571 = vrot.lane.b32.xlu0 %v438, 8
        %v572 = vpop.permute.xlu0 %571
        %575 = vrot.lane.b32.xlu0 %v503, 16
        %v576 = vpop.permute.xlu0 %575
        %579 = vrot.lane.b32.xlu0 %v568, 24
        %v580 = vpop.permute.xlu0 %579
        %v582 = vsel %vm312, %v373, %v572
        %vm583 = vcmask 130048
        %v584 = vsel %vm583, %v582, %v576
        %vm585 = vcmask 195584
        %v586 = vsel %vm585, %v584, %v580
        %v587 = vld [vmem:[#allocation7] sm:$0xff]
        %v588 = vld [vmem:[#allocation7 + $0x8] sm:$0xff]
        %v589 = vld [vmem:[#allocation7 + $0x10] sm:$0xff]
        %v590 = vld [vmem:[#allocation7 + $0x18] sm:$0xff]
        %v591 = vld [vmem:[%s4] sm:$0x1]
        %v593 = vperm.slane %v591, 0
        %v596 = vsel %vm284, %v586, 0
        %598 = vmatpush.msra.mxu0 0.0
        %599 = vmatpush.msra.mxu0 0.0
        %600 = vmatpush.msra.mxu0 0.0
        %601 = vmatpush.msra.mxu0 0.0
        %602 = vmatpush.msra.mxu0 0.0
        %603 = vmatpush.msra.mxu0 0.0
        %604 = vmatpush.msra.mxu0 0.0
        %605 = vmatpush.msra.mxu0 0.0
        %606 = vmatpush.msra.mxu0 0.0
        %607 = vmatpush.msra.mxu0 0.0
        %608 = vmatpush.msra.mxu0 0.0
        %609 = vmatpush.msra.mxu0 0.0
        %610 = vmatpush.msra.mxu0 %v590
        %611 = vmatpush.msra.mxu0 %v589
        %612 = vmatpush.msra.mxu0 %v588
        %613 = vmatpush.msra.mxu0 %v587
        %614 = vmatmul.f32.gmra.mxu0 %v596
        %v615 = vpop.f32.mrf.mxu0
        %v616 = vadd.f32 %v593, %v615
        %617 = vdwg.mxu0
        %618 = vst.msk [vmem:[%s274] sm:$0xff] %vm284, %v616
        %s619 = sand.u32 %s141, 1
        %s620 = scalar_lea.sflag [#allocation4], %s619
        %s621 = sand.u32 %s141, 1
        %s622 = smul.addr %s621, 8
        %s623 = scalar_lea.vmem [#allocation8], %s622
        // Predicated region
        $region53: #{tpu_custom_call.1} parent=39 // pred_check
          %p624 = pneg %p151
        $region54: #{tpu_custom_call.1} parent=39 // pred_check_branch
          %626 = sbr.rel (%p624) target = $region56
        $region55: #{tpu_custom_call.1} parent=39 // pred_region
          %628 = vsyncadd %s620, 0
          %s629 = smul.addr %s23, 8
          %s630 = scalar_lea.hbm %s5, %s629
          %s632 = sshll.u32 %s623, 4
          %s633 = int_to_ptr.vmem [resolvable:$true] %s632
          %s634 = sshll.u32 %s630, 4
          %s635 = int_to_ptr.hbm [resolvable:$true] %s634
          %637 = dma.vmem_to_hbm [thread:$0]  %s633, 128, %s635, %s620
        $region56: #{tpu_custom_call.1} parent=39 // pred_fallthru
          _
      $region40: #{tpu_custom_call.1} parent=5 // pred_fallthru
        _
      %p638 = scmp.le.s32.totalorder 2, %s18
      // Predicated region
      $region57: #{tpu_custom_call.1} parent=5 // pred_check
        %p639 = pneg %p638
      $region58: #{tpu_custom_call.1} parent=5 // pred_check_branch
        %641 = sbr.rel (%p639) target = $region60
      $region59: #{tpu_custom_call.1} parent=5 // pred_region
        %s642 = ssub.s32 %s18, 2
        // Predicated region
        $region61: #{tpu_custom_call.1} parent=59 // pred_check
          %p643 = pneg %p157
        $region62: #{tpu_custom_call.1} parent=59 // pred_check_branch
          %645 = sbr.rel (%p643) target = $region64
        $region63: #{tpu_custom_call.1} parent=59 // pred_region
          %s646 = sand.u32 %s142, 1
          %s647 = scalar_lea.sflag [#allocation4], %s646
          %s648 = sand.u32 %s142, 1
          %s649 = smul.addr %s648, 8
          %s650 = scalar_lea.vmem [#allocation8], %s649
          %652 = dma.done %s647, 128
        $region64: #{tpu_custom_call.1} parent=59 // pred_fallthru
          _
      $region60: #{tpu_custom_call.1} parent=5 // pred_fallthru
        _
    $region6: #{tpu_custom_call.1} parent=1 // loop_footer
      %s22 = sadd.s32 1, %s18
    $region7: #{tpu_custom_call.1} parent=1 // loop_footer_branch
      %17 = sbr.rel target = $region3
    $region8: #{tpu_custom_call.1} parent=1 // loop_exit
      _
    %653 = vsyncpa [#allocation3], 1
    %s654 = scalar_lea.sflag [#allocation3], 1
    %655 = vsyncpa %s654, 1
    %656 = vsyncpa [#allocation6], 1
    %657 = vsyncpa [#allocation4], 1
    %s658 = scalar_lea.sflag [#allocation4], 1
    %659 = vsyncpa %s658, 1

</llo_original>
